<compile_context>
chip_gen: v7x
topology: tpu7x:2x2x1
jax: 0.10.0
libtpu: 0.0.40
codegen_flags: <defaults>
</compile_context>

<pallas_src>
import functools

import jax
import jax.numpy as jnp
from jax.experimental import pallas as pl
from jax.experimental.pallas import tpu as pltpu

_STATIC_UNROLL_MAX_CHUNKS = 8


def _concat_pool_kernel(x_ref, out_ref, max_acc, sum_acc, *,
                        hw, hw_blk, num_chunks, chunk_w, needs_mask,
                        unroll_static, inv_hw):
    # x_ref block: (n_blk, c_blk, hw_blk); out_ref block: (n_blk, 2, c_blk)
    # max_acc/sum_acc: (n_blk, c_blk, chunk_w) f32 lane-partial accumulators.
    k = pl.program_id(2)

    @pl.when(k == 0)
    def _init():
        max_acc[...] = jnp.full_like(max_acc, -jnp.inf)
        sum_acc[...] = jnp.zeros_like(sum_acc)

    base = k * hw_blk
    if needs_mask:
        # Hoisted once per step; broadcast against every chunk.
        lane = jax.lax.broadcasted_iota(jnp.int32, (1, 1, chunk_w), 2)

    def accumulate(start, chunk):
        # One shared upconvert feeds both reductions (max in f32 is exact for
        # f32/bf16/f16 values); pure VALU, no cross-lane work here.
        chunk = chunk.astype(jnp.float32)
        if needs_mask:
            valid = (lane + start) < hw
            cmax = jnp.where(valid, chunk, -jnp.inf)
            csum = jnp.where(valid, chunk, 0.0)
        else:
            cmax = chunk
            csum = chunk
        max_acc[...] = jnp.maximum(max_acc[...], cmax)
        sum_acc[...] = sum_acc[...] + csum

    if unroll_static:
        for j in range(num_chunks):
            accumulate(base + j * chunk_w,
                       x_ref[:, :, j * chunk_w:(j + 1) * chunk_w])
    else:
        def body(j, carry):
            off = pl.multiple_of(j * chunk_w, chunk_w)
            accumulate(base + off, x_ref[:, :, pl.ds(off, chunk_w)])
            return carry
        jax.lax.fori_loop(0, num_chunks, body, None)

    @pl.when(k == pl.num_programs(2) - 1)
    def _finalize():
        # Single cross-lane (XLU) reduce per (n, c) block.
        mx = jnp.max(max_acc[...], axis=-1)           # (n_blk, c_blk)
        av = jnp.sum(sum_acc[...], axis=-1) * inv_hw  # (n_blk, c_blk)
        out_ref[:, 0, :] = mx.astype(out_ref.dtype)
        out_ref[:, 1, :] = av.astype(out_ref.dtype)


def _largest_mult128_divisor(n, cap):
    b = (cap // 128) * 128
    while b >= 128:
        if n % b == 0:
            return b
        b -= 128
    return None


def _largest_divisor_leq(n, cap):
    cap = max(1, min(n, cap))
    for d in range(cap, 0, -1):
        if n % d == 0:
            return d
    return 1


def _padded_bytes(n, sub, lane, itemsize):
    # VMEM tiles pad the sublane dim to 8 and the lane dim to 128.
    sub_p = -(-sub // 8) * 8
    lane_p = -(-lane // 128) * 128
    return n * sub_p * lane_p * itemsize


def _default_tile_bytes_target():
    kind = ""
    try:
        kind = jax.devices()[0].device_kind.lower()
    except Exception:
        pass
    if "v7" in kind:
        return 8 << 20    # v7x: 64 MiB VMEM/TC -> keep 2x-buffered input small
    if "v5" in kind or "v6" in kind:
        return 16 << 20   # 128 MiB VMEM -> amortize per-step overhead harder
    return 8 << 20        # unknown chip: conservative


def adaptive_concat_pool2d(x, *, tile_bytes_target=None, c_block_target=512,
                           max_chunks_per_step=64):
    """x: (N, C, H, W) -> (N, 2*C, 1, 1), matching AdaptiveConcatPool2d(sz=(1,1))."""
    N, C, H, W = x.shape
    hw = H * W
    x_flat = x.reshape(N, C, hw)
    itemsize = jnp.dtype(x.dtype).itemsize

    if tile_bytes_target is None:
        tile_bytes_target = _default_tile_bytes_target()

    # --- channel block: full C if small, else a multiple-of-128 divisor ---
    if C <= c_block_target:
        c_blk = C
    else:
        c_blk = _largest_mult128_divisor(C, c_block_target) or C

    # --- ensure >= 2 parallel grid blocks when N == 1 (v7x has 2 TCs) ---
    if N == 1 and c_blk == C and C >= 256:
        half = _largest_mult128_divisor(C, C // 2)
        if half is not None:
            c_blk = half

    # --- spatial block: 128-lane chunks, bounded by the VMEM tile budget ---
    if hw <= 128:
        chunk_w = hw
        num_chunks = 1
        hw_blk = hw
    else:
        chunk_w = 128
        slab_bytes = _padded_bytes(1, c_blk, 128, itemsize)
        chunks_budget = max(1, tile_bytes_target // slab_bytes)
        num_chunks = int(min(hw // 128, chunks_budget, max_chunks_per_step))
        hw_blk = 128 * num_chunks
    grid_k = int(pl.cdiv(hw, hw_blk))
    needs_mask = (hw % hw_blk) != 0
    unroll_static = num_chunks <= _STATIC_UNROLL_MAX_CHUNKS

    # --- batch block: batch images per step when C*HW is small so the
    #     per-step DMA stays large enough to amortize step overhead ---
    tile_bytes_1 = _padded_bytes(1, c_blk, hw_blk, itemsize)
    max_n_blk = max(1, tile_bytes_target // tile_bytes_1)
    if C // c_blk < 2 and N >= 2:
        max_n_blk = min(max_n_blk, N // 2)   # keep >= 2 parallel blocks
    n_blk = _largest_divisor_leq(N, max_n_blk)

    grid = (N // n_blk, C // c_blk, grid_k)

    in_tile_bytes = _padded_bytes(n_blk, c_blk, hw_blk, itemsize)
    acc_bytes = 2 * _padded_bytes(n_blk, c_blk, chunk_w, 4)
    out_tile_bytes = _padded_bytes(n_blk, 2, c_blk, itemsize)
    vmem_limit = int(min(
        110 << 20,
        max(16 << 20, 2 * in_tile_bytes + acc_bytes + 2 * out_tile_bytes + (2 << 20))))

    cost = pl.CostEstimate(
        flops=2 * N * C * hw,
        transcendentals=0,
        bytes_accessed=N * C * hw * itemsize + N * 2 * C * itemsize,
    )

    kernel = functools.partial(
        _concat_pool_kernel,
        hw=hw, hw_blk=hw_blk, num_chunks=num_chunks, chunk_w=chunk_w,
        needs_mask=needs_mask, unroll_static=unroll_static,
        inv_hw=1.0 / float(hw),
    )

    out = pl.pallas_call(
        kernel,
        out_shape=jax.ShapeDtypeStruct((N, 2, C), x.dtype),
        grid_spec=pltpu.PrefetchScalarGridSpec(
            num_scalar_prefetch=0,
            grid=grid,
            in_specs=[
                pl.BlockSpec((n_blk, c_blk, hw_blk), lambda n, c, k: (n, c, k)),
            ],
            out_specs=pl.BlockSpec((n_blk, 2, c_blk), lambda n, c, k: (n, 0, c)),
            scratch_shapes=[
                pltpu.VMEM((n_blk, c_blk, chunk_w), jnp.float32),  # running lane-max
                pltpu.VMEM((n_blk, c_blk, chunk_w), jnp.float32),  # running lane-sum
            ],
        ),
        compiler_params=pltpu.CompilerParams(
            dimension_semantics=("parallel", "parallel", "arbitrary"),
            vmem_limit_bytes=vmem_limit,
        ),
        cost_estimate=cost,
    )(x_flat)

    # (N, 2, C) -> (N, 2C, 1, 1): row 0 = max channels, row 1 = avg channels,
    # exactly torch.cat([max_pool, avg_pool], dim=1) ordering.
    return out.reshape(N, 2 * C, 1, 1)


def _reference(x):
    mx = jnp.max(x, axis=(2, 3), keepdims=True)
    av = jnp.mean(x, axis=(2, 3), keepdims=True)
    return jnp.concatenate([mx, av], axis=1)


if __name__ == "__main__":
    key = jax.random.PRNGKey(0)
    k0, k1 = jax.random.split(key)

    # Primary small shape implied by the module's forward.
    x = jax.random.normal(k0, (2, 4, 16, 16), dtype=jnp.float32)
    out = jax.block_until_ready(adaptive_concat_pool2d(x))
    assert out.shape == (2, 8, 1, 1), out.shape
    assert jnp.allclose(out, _reference(x), atol=1e-5, rtol=1e-5), "mismatch (aligned)"

    # Ragged spatial extent: exercises the cdiv grid + in-kernel tail masking.
    x2 = jax.random.normal(k1, (2, 3, 15, 15), dtype=jnp.float32)
    out2 = jax.block_until_ready(adaptive_concat_pool2d(x2))
    assert out2.shape == (2, 6, 1, 1), out2.shape
    assert jnp.allclose(out2, _reference(x2), atol=1e-5, rtol=1e-5), "mismatch (ragged)"

    print("KERNEL_OK")
</pallas_src>

<mosaic_0001>
module attributes {stable_mosaic.version = 11 : i64} {
  func.func @_concat_pool_kernel(%arg0: i32, %arg1: i32, %arg2: i32, %arg3: memref<1x4x256xf32, #tpu.memory_space<vmem>>, %arg4: memref<1x2x4xf32, #tpu.memory_space<vmem>>, %arg5: memref<1x4x128xf32, #tpu.memory_space<vmem>>, %arg6: memref<1x4x128xf32, #tpu.memory_space<vmem>>) attributes {dimension_semantics = [#tpu.dimension_semantics<parallel>, #tpu.dimension_semantics<parallel>, #tpu.dimension_semantics<arbitrary>], iteration_bounds = array<i64: 2, 1, 1>, scalar_prefetch = 0 : i64, scratch_operands = 2 : i64, tpu.core_type = #tpu.core_type<tc>, window_params = [{transform_indices = @transform_0, window_bounds = array<i64: 1, 4, 256>}, {transform_indices = @transform_1, window_bounds = array<i64: 1, 2, 4>}]} {
    %c0_i32 = arith.constant 0 : i32
    %0 = arith.cmpi eq, %arg2, %c0_i32 : i32
    %1 = arith.extui %0 : i1 to i32
    %c0_i32_0 = arith.constant 0 : i32
    %2 = arith.cmpi ne, %1, %c0_i32_0 : i32
    scf.if %2 {
      %cst = arith.constant 0xFF800000 : f32
      %20 = vector.broadcast %cst : f32 to vector<1x4x128xf32>
      %c0_31 = arith.constant 0 : index
      %c0_32 = arith.constant 0 : index
      %c0_33 = arith.constant 0 : index
      %21 = vector.load %arg5[%c0_31, %c0_32, %c0_33] : memref<1x4x128xf32, #tpu.memory_space<vmem>>, vector<1x4x128xf32>
      tpu.vector_store %arg5[%c0_31, %c0_32, %c0_33], %20 {strides = array<i32>} : memref<1x4x128xf32, #tpu.memory_space<vmem>>, vector<1x4x128xf32>,
      %cst_34 = arith.constant 0.000000e+00 : f32
      %22 = vector.broadcast %cst_34 : f32 to vector<1x4x128xf32>
      %c0_35 = arith.constant 0 : index
      %c0_36 = arith.constant 0 : index
      %c0_37 = arith.constant 0 : index
      %23 = vector.load %arg6[%c0_35, %c0_36, %c0_37] : memref<1x4x128xf32, #tpu.memory_space<vmem>>, vector<1x4x128xf32>
      tpu.vector_store %arg6[%c0_35, %c0_36, %c0_37], %22 {strides = array<i32>} : memref<1x4x128xf32, #tpu.memory_space<vmem>>, vector<1x4x128xf32>,
    } else {
    }
    %c0 = arith.constant 0 : index
    %c0_1 = arith.constant 0 : index
    %c0_2 = arith.constant 0 : index
    %3 = vector.load %arg3[%c0, %c0_1, %c0_2] : memref<1x4x256xf32, #tpu.memory_space<vmem>>, vector<1x4x128xf32>
    %c0_3 = arith.constant 0 : index
    %c0_4 = arith.constant 0 : index
    %c0_5 = arith.constant 0 : index
    %4 = vector.load %arg5[%c0_3, %c0_4, %c0_5] : memref<1x4x128xf32, #tpu.memory_space<vmem>>, vector<1x4x128xf32>
    %5 = arith.maximumf %4, %3 : vector<1x4x128xf32>
    %c0_6 = arith.constant 0 : index
    %c0_7 = arith.constant 0 : index
    %c0_8 = arith.constant 0 : index
    %6 = vector.load %arg5[%c0_6, %c0_7, %c0_8] : memref<1x4x128xf32, #tpu.memory_space<vmem>>, vector<1x4x128xf32>
    tpu.vector_store %arg5[%c0_6, %c0_7, %c0_8], %5 {strides = array<i32>} : memref<1x4x128xf32, #tpu.memory_space<vmem>>, vector<1x4x128xf32>,
    %c0_9 = arith.constant 0 : index
    %c0_10 = arith.constant 0 : index
    %c0_11 = arith.constant 0 : index
    %7 = vector.load %arg6[%c0_9, %c0_10, %c0_11] : memref<1x4x128xf32, #tpu.memory_space<vmem>>, vector<1x4x128xf32>
    %8 = arith.addf %7, %3 : vector<1x4x128xf32>
    %c0_12 = arith.constant 0 : index
    %c0_13 = arith.constant 0 : index
    %c0_14 = arith.constant 0 : index
    %9 = vector.load %arg6[%c0_12, %c0_13, %c0_14] : memref<1x4x128xf32, #tpu.memory_space<vmem>>, vector<1x4x128xf32>
    tpu.vector_store %arg6[%c0_12, %c0_13, %c0_14], %8 {strides = array<i32>} : memref<1x4x128xf32, #tpu.memory_space<vmem>>, vector<1x4x128xf32>,
    %c0_15 = arith.constant 0 : index
    %c0_16 = arith.constant 0 : index
    %c128 = arith.constant 128 : index
    %10 = vector.load %arg3[%c0_15, %c0_16, %c128] : memref<1x4x256xf32, #tpu.memory_space<vmem>>, vector<1x4x128xf32>
    %c0_17 = arith.constant 0 : index
    %c0_18 = arith.constant 0 : index
    %c0_19 = arith.constant 0 : index
    %11 = vector.load %arg5[%c0_17, %c0_18, %c0_19] : memref<1x4x128xf32, #tpu.memory_space<vmem>>, vector<1x4x128xf32>
    %12 = arith.maximumf %11, %10 : vector<1x4x128xf32>
    %c0_20 = arith.constant 0 : index
    %c0_21 = arith.constant 0 : index
    %c0_22 = arith.constant 0 : index
    %13 = vector.load %arg5[%c0_20, %c0_21, %c0_22] : memref<1x4x128xf32, #tpu.memory_space<vmem>>, vector<1x4x128xf32>
    tpu.vector_store %arg5[%c0_20, %c0_21, %c0_22], %12 {strides = array<i32>} : memref<1x4x128xf32, #tpu.memory_space<vmem>>, vector<1x4x128xf32>,
    %c0_23 = arith.constant 0 : index
    %c0_24 = arith.constant 0 : index
    %c0_25 = arith.constant 0 : index
    %14 = vector.load %arg6[%c0_23, %c0_24, %c0_25] : memref<1x4x128xf32, #tpu.memory_space<vmem>>, vector<1x4x128xf32>
    %15 = arith.addf %14, %10 : vector<1x4x128xf32>
    %c0_26 = arith.constant 0 : index
    %c0_27 = arith.constant 0 : index
    %c0_28 = arith.constant 0 : index
    %16 = vector.load %arg6[%c0_26, %c0_27, %c0_28] : memref<1x4x128xf32, #tpu.memory_space<vmem>>, vector<1x4x128xf32>
    tpu.vector_store %arg6[%c0_26, %c0_27, %c0_28], %15 {strides = array<i32>} : memref<1x4x128xf32, #tpu.memory_space<vmem>>, vector<1x4x128xf32>,
    %c0_i32_29 = arith.constant 0 : i32
    %17 = arith.cmpi eq, %arg2, %c0_i32_29 : i32
    %18 = arith.extui %17 : i1 to i32
    %c0_i32_30 = arith.constant 0 : i32
    %19 = arith.cmpi ne, %18, %c0_i32_30 : i32
    scf.if %19 {
      %c0_31 = arith.constant 0 : index
      %c0_32 = arith.constant 0 : index
      %c0_33 = arith.constant 0 : index
      %20 = vector.load %arg5[%c0_31, %c0_32, %c0_33] : memref<1x4x128xf32, #tpu.memory_space<vmem>>, vector<1x4x128xf32>
      %cst = arith.constant dense<0xFF800000> : vector<1x4xf32>
      %21 = vector.multi_reduction <maximumf>, %20, %cst [2] : vector<1x4x128xf32> to vector<1x4xf32>
      %c0_34 = arith.constant 0 : index
      %c0_35 = arith.constant 0 : index
      %c0_36 = arith.constant 0 : index
      %22 = vector.load %arg6[%c0_34, %c0_35, %c0_36] : memref<1x4x128xf32, #tpu.memory_space<vmem>>, vector<1x4x128xf32>
      %cst_37 = arith.constant dense<0.000000e+00> : vector<1x4xf32>
      %23 = vector.multi_reduction <add>, %22, %cst_37 [2] : vector<1x4x128xf32> to vector<1x4xf32>
      %cst_38 = arith.constant 3.906250e-03 : f32
      %24 = vector.broadcast %cst_38 : f32 to vector<1x4xf32>
      %25 = arith.mulf %23, %24 : vector<1x4xf32>
      %c0_39 = arith.constant 0 : index
      %c0_40 = arith.constant 0 : index
      %c0_41 = arith.constant 0 : index
      %26 = vector.load %arg4[%c0_39, %c0_40, %c0_41] : memref<1x2x4xf32, #tpu.memory_space<vmem>>, vector<1x1x4xf32>
      %27 = vector.shape_cast %26 : vector<1x1x4xf32> to vector<1x4xf32>
      %28 = vector.shape_cast %21 : vector<1x4xf32> to vector<1x1x4xf32>
      tpu.vector_store %arg4[%c0_39, %c0_40, %c0_41], %28 {strides = array<i32>} : memref<1x2x4xf32, #tpu.memory_space<vmem>>, vector<1x1x4xf32>,
      %c0_42 = arith.constant 0 : index
      %c1 = arith.constant 1 : index
      %c0_43 = arith.constant 0 : index
      %29 = vector.load %arg4[%c0_42, %c1, %c0_43] : memref<1x2x4xf32, #tpu.memory_space<vmem>>, vector<1x1x4xf32>
      %30 = vector.shape_cast %29 : vector<1x1x4xf32> to vector<1x4xf32>
      %31 = vector.shape_cast %25 : vector<1x4xf32> to vector<1x1x4xf32>
      tpu.vector_store %arg4[%c0_42, %c1, %c0_43], %31 {strides = array<i32>} : memref<1x2x4xf32, #tpu.memory_space<vmem>>, vector<1x1x4xf32>,
    } else {
    }
    return
  }
  func.func @transform_0(%arg0: i32, %arg1: i32, %arg2: i32) -> (i32, i32, i32) {
    %c0_i32 = arith.constant 0 : i32
    return %arg0, %arg1, %arg2 : i32, i32, i32
  }
  func.func @transform_1(%arg0: i32, %arg1: i32, %arg2: i32) -> (i32, i32, i32) {
    %c0_i32 = arith.constant 0 : i32
    %c0_i32_0 = arith.constant 0 : i32
    return %arg0, %c0_i32, %arg1 : i32, i32, i32
  }
}

</mosaic_0001>

<llo_original>
// kernel: tpu_custom_call.1
$region0: #{tpu_custom_call.1}
  #allocation0 [shape = 'u32[]', space=smem, size = 0x4, offset = 0x4, fixed_abs, tag = 'smem constant byte address 0x4 - core index']
  #allocation1 [shape = 'u32[144,128]{1,0:T(1,128)}', space=vmem, size = 0x12000, scoped, tag = 'internal scratch']
  #allocation2 [shape = 'f32[1,4,128]{2,1,0:T(4,128)}', space=vmem, size = 0x800, scoped, tag = 'scratch operand']
  #allocation3 [shape = 'f32[1,4,128]{2,1,0:T(4,128)}', space=vmem, size = 0x800, scoped, tag = 'scratch operand']
  %s0 = inlined_call_operand.hbm [shape: f32[2,4,256], index: 0, kind: input, shape index: {}]
  %s1 = inlined_call_operand.hbm [shape: f32[2,2,4], index: 1, kind: output, shape index: {}]
  %s2 = sld [smem:[#allocation0]]
  $region49: #{tpu_custom_call.1} parent=0
    _
  %s4 = ssub.s32 1, %s2
  %s5 = scalar_select 0, %s4, %s2
  $region1: #{tpu_custom_call.1} parent=0
    #allocation4 [shape = 'u8[8192]{0}', space=vmem, size = 0x2000, scoped, tag = 'input window, operand 0']
    #allocation5 [shape = 's32[2]{0}', space=sflag, size = 0x8, scoped, tag = 'scoped memory for tpu_custom_call.1']
    #allocation6 [shape = 's32[2]{0}', space=sflag, size = 0x8, scoped, tag = 'scoped memory for tpu_custom_call.1']
    #allocation7 [shape = 'u8[2048]{0}', space=vmem, size = 0x800, scoped, tag = 'output window, operand 0']
    %6 = vsyncpa [#allocation5], 0
    %s7 = scalar_lea.sflag [#allocation5], 1
    %8 = vsyncpa %s7, 0
    %9 = vsyncpa [#allocation6], 0
    %s10 = scalar_lea.sflag [#allocation6], 1
    %11 = vsyncpa %s10, 0
    loop: start=0, step=1, limit=4
    $region2: #{tpu_custom_call.1} parent=1 // loop_pre_header
      _
    $region3: #{tpu_custom_call.1} parent=1 // loop_header
      %s13 = sphi 0, %s17
      %p14 = scmp.ge.s32.totalorder %s13, 4
      %s20 = sphi 0, %s39
      %s21 = sphi 0, %s35
      %s22 = sphi 0, %s31
      %s23 = sphi 0, %s20
      %s24 = sphi 0, %s21
      %s25 = sphi 0, %s22
      %s26 = sphi 0, %s23
      %s27 = sphi 0, %s24
      %s28 = sphi 0, %s25
      %s46 = sphi 0, %s48
      %s49 = sphi 0, %s46
      %s50 = sphi 0, %s49
      %s66 = sphi 0, %s50
      %s74 = sphi 0, %s76
      %s77 = sphi 0, %s74
      %s78 = sphi 0, %s77
      %s94 = sphi 0, %s78
    $region4: #{tpu_custom_call.1} parent=1 // loop_header_branch
      %16 = sbr.rel (%p14) target = $region8
    $region5: #{tpu_custom_call.1} parent=1 // loop_body
      %s18 = ssub.s32 %s13, 1
      %s19 = ssub.s32 %s13, 2
      %s29 = sadd.s32 1, %s22
      %p30 = scmp.ge.s32.totalorder %s29, 1
      %s31 = scalar_select %p30, 0, %s29
      %s32 = sadd.s32 1, %s21
      %s33 = scalar_select %p30, %s32, %s21
      %p34 = scmp.ge.s32.totalorder %s33, 1
      %s35 = scalar_select %p34, 0, %s33
      %s36 = sadd.s32 1, %s20
      %s37 = scalar_select %p34, %s36, %s20
      %p38 = scmp.ge.s32.totalorder %s37, 2
      %s39 = scalar_select %p38, 0, %s37
      %s40 = ssub.s32 %s20, %s39
      %s41 = ssub.s32 %s21, %s35
      %s42 = sor.u32 %s40, %s41
      %s43 = ssub.s32 %s22, %s31
      %s44 = sor.u32 %s42, %s43
      %p45 = scmp.eq.s32.totalorder %s44, 0
      %s47 = sadd.s32 %s46, 1
      %s48 = scalar_select %p45, %s46, %s47
      %p51 = pneg %p45
      %p52 = scmp.eq.s32.totalorder %s13, 1
      %p53 = por %p51, %p52
      %p54 = scmp.ne.s32.totalorder %s46, %s49
      %p55 = scmp.eq.s32.totalorder %s13, 0
      %p56 = por %p54, %p55
      %p57 = scmp.ne.s32.totalorder %s46, %s49
      %p58 = scmp.eq.s32.totalorder %s18, 1
      %p59 = por %p57, %p58
      %p60 = scmp.ne.s32.totalorder %s49, %s50
      %p61 = scmp.eq.s32.totalorder %s18, 0
      %p62 = por %p60, %p61
      %p63 = scmp.ne.s32.totalorder %s49, %s50
      %p64 = scmp.eq.s32.totalorder %s19, 1
      %p65 = por %p63, %p64
      %p67 = scmp.ne.s32.totalorder %s50, %s66
      %p68 = scmp.eq.s32.totalorder %s19, 0
      %p69 = por %p67, %p68
      %s70 = ssub.s32 %s20, %s39
      %s71 = ssub.s32 %s21, %s35
      %s72 = sor.u32 %s70, %s71
      %p73 = scmp.eq.s32.totalorder %s72, 0
      %s75 = sadd.s32 %s74, 1
      %s76 = scalar_select %p73, %s74, %s75
      %p79 = pneg %p73
      %p80 = scmp.eq.s32.totalorder %s13, 1
      %p81 = por %p79, %p80
      %p82 = scmp.ne.s32.totalorder %s74, %s77
      %p83 = scmp.eq.s32.totalorder %s13, 0
      %p84 = por %p82, %p83
      %p85 = scmp.ne.s32.totalorder %s74, %s77
      %p86 = scmp.eq.s32.totalorder %s18, 1
      %p87 = por %p85, %p86
      %p88 = scmp.ne.s32.totalorder %s77, %s78
      %p89 = scmp.eq.s32.totalorder %s18, 0
      %p90 = por %p88, %p89
      %p91 = scmp.ne.s32.totalorder %s77, %s78
      %p92 = scmp.eq.s32.totalorder %s19, 1
      %p93 = por %p91, %p92
      %p95 = scmp.ne.s32.totalorder %s78, %s94
      %p96 = scmp.eq.s32.totalorder %s19, 0
      %p97 = por %p95, %p96
      %p98 = scmp.le.s32.totalorder 1, %s13
      %p99 = scmp.lt.s32.totalorder %s13, 3
      %p100 = pnand %p98, %p99
      %p101 = pneg %p100
      // Predicated region
      $region9: #{tpu_custom_call.1} parent=5 // pred_check
        _
      $region10: #{tpu_custom_call.1} parent=5 // pred_check_branch
        %103 = sbr.rel (%p100) target = $region12
      $region11: #{tpu_custom_call.1} parent=5 // pred_region
        %s104 = ssub.s32 %s13, 1
      $region12: #{tpu_custom_call.1} parent=5 // pred_fallthru
        _
      %p105 = scmp.lt.s32.totalorder %s13, 2
      // Predicated region
      $region13: #{tpu_custom_call.1} parent=5 // pred_check
        %p106 = pneg %p105
      $region14: #{tpu_custom_call.1} parent=5 // pred_check_branch
        %108 = sbr.rel (%p106) target = $region16
      $region15: #{tpu_custom_call.1} parent=5 // pred_region
        // Predicated region
        $region17: #{tpu_custom_call.1} parent=15 // pred_check
          %p109 = pneg %p56
        $region18: #{tpu_custom_call.1} parent=15 // pred_check_branch
          %111 = sbr.rel (%p109) target = $region20
        $region19: #{tpu_custom_call.1} parent=15 // pred_region
          %s112 = sand.u32 %s46, 1
          %s113 = scalar_lea.sflag [#allocation5], %s112
          %s114 = sand.u32 %s46, 1
          %s115 = smul.addr %s114, 8
          %s116 = scalar_lea.vmem [#allocation4], %s115
          %s117 = smul.u32 2, %s22
          %s119 = ssub.s32 128, 128
          %120 = vsyncadd %s113, %s119
          %s121 = smul.addr %s21, 2
          %s122 = sadd.s32 %s117, %s121
          %s123 = smul.addr %s20, 2
          %s124 = sadd.s32 %s122, %s123
          %s125 = smul.addr %s124, 64
          %s126 = scalar_lea.hbm %s0, %s125
          %s128 = sshll.u32 %s116, 4
          %s129 = int_to_ptr.vmem [resolvable:$true] %s128
          %131 = dma.hbm_to_vmem [thread:$0]  %s126, 128, %s129, %s113
        $region20: #{tpu_custom_call.1} parent=15 // pred_fallthru
          _
      $region16: #{tpu_custom_call.1} parent=5 // pred_fallthru
        _
      %p132 = scmp.le.s32.totalorder 1, %s13
      %p133 = scmp.lt.s32.totalorder %s13, 3
      %p134 = pnand %p132, %p133
      %p135 = pneg %p134
      // Predicated region
      $region21: #{tpu_custom_call.1} parent=5 // pred_check
        _
      $region22: #{tpu_custom_call.1} parent=5 // pred_check_branch
        %137 = sbr.rel (%p134) target = $region24
      $region23: #{tpu_custom_call.1} parent=5 // pred_region
        %s138 = ssub.s32 %s13, 1
        %s139 = sand.u32 %s49, 1
        %s140 = scalar_lea.sflag [#allocation5], %s139
        %s141 = sand.u32 %s49, 1
        %s142 = smul.addr %s141, 8
        %s143 = scalar_lea.vmem [#allocation4], %s142
        // Predicated region
        $region25: #{tpu_custom_call.1} parent=23 // pred_check
          %p144 = pneg %p62
        $region26: #{tpu_custom_call.1} parent=23 // pred_check_branch
          %146 = sbr.rel (%p144) target = $region28
        $region27: #{tpu_custom_call.1} parent=23 // pred_region
          %147 = dma.done %s140, 128
        $region28: #{tpu_custom_call.1} parent=23 // pred_fallthru
          _
        %s148 = sand.u32 %s49, 1
        %s149 = scalar_lea.sflag [#allocation5], %s148
        %s150 = sand.u32 %s49, 1
        %s151 = smul.addr %s150, 8
        %s152 = scalar_lea.vmem [#allocation4], %s151
        %p153 = pneg %p62
        %p154 = pneg %p59
        %p155 = pneg %p90
        %p156 = pneg %p87
        %s157 = sand.u32 %s77, 1
        %s158 = scalar_lea.sflag [#allocation6], %s157
        %s159 = sand.u32 %s77, 1
        %s160 = smul.addr %s159, 2
        %s161 = scalar_lea.vmem [#allocation7], %s160
        %s162 = smul.u32 2, %s25
        %p163 = scmp.eq.s32.totalorder %s25, 0
        // Predicated region
        $region29: #{tpu_custom_call.1} parent=23 // pred_check
          %p164 = pneg %p163
        $region30: #{tpu_custom_call.1} parent=23 // pred_check_branch
          %166 = sbr.rel (%p164) target = $region32
        $region31: #{tpu_custom_call.1} parent=23 // pred_region
          %167 = vst [vmem:[#allocation2] sm:$0xf] -inf
          %168 = vst [vmem:[#allocation3] sm:$0xf] 0.0
        $region32: #{tpu_custom_call.1} parent=23 // pred_fallthru
          _
        %v169 = vld [vmem:[%s143] sm:$0xf]
        %v170 = vld [vmem:[#allocation2] sm:$0xf]
        %v171 = vmax.f32 %v170, %v169
        %172 = vst [vmem:[#allocation2] sm:$0xf] %v171
        %v173 = vld [vmem:[#allocation3] sm:$0xf]
        %v174 = vadd.f32 %v173, %v169
        %175 = vst [vmem:[#allocation3] sm:$0xf] %v174
        %v176 = vld [vmem:[%s143 + $0x4] sm:$0xf]
        %v177 = vld [vmem:[#allocation2] sm:$0xf]
        %v178 = vmax.f32 %v177, %v176
        %179 = vst [vmem:[#allocation2] sm:$0xf] %v178
        %v180 = vld [vmem:[#allocation3] sm:$0xf]
        %v181 = vadd.f32 %v180, %v176
        %182 = vst [vmem:[#allocation3] sm:$0xf] %v181
        // Predicated region
        $region33: #{tpu_custom_call.1} parent=23 // pred_check
          %p183 = pneg %p163
        $region34: #{tpu_custom_call.1} parent=23 // pred_check_branch
          %185 = sbr.rel (%p183) target = $region36
        $region35: #{tpu_custom_call.1} parent=23 // pred_region
          %v186 = vld [vmem:[#allocation2] sm:$0xf]
          %vm187 = vcmask 1043456
          %v188 = vsel %vm187, %v186, -inf
          %189 = vmax.xlane.f32.xlu0 %v188
          %v190 = vpop.xlane.xlu0 %189
          %v191 = vld [vmem:[#allocation3] sm:$0xf]
          %v192 = vsel %vm187, %v191, 0.0
          %193 = vadd.xlane.f32.xlu0 %v192
          %v194 = vpop.xlane.xlu0 %193
          %v195 = vmul.f32 %v194, 0.00390625
          %v197 = vlaneseq
          %v198 = vand.u32 %v197, 127
          %v199 = vlaneseq
          %v200 = vshrl.u32 %v199, 7
          %v201 = vsub.s32 %v198, %v200
          %v202 = vrot.slane %v190, %v201
          %vm204 = vcmask 24576
          %205 = vst.msk [vmem:[%s161] sm:$0x1] %vm204, %v202
          %v207 = vlaneseq
          %v208 = vshrl.u32 %v207, 7
          %v209 = vsub.s32 %v198, %v208
          %v210 = vrot.slane %v195, %v209
          %212 = vst.msk [vmem:[%s161 + $0x1] sm:$0x1] %vm204, %v210
        $region36: #{tpu_custom_call.1} parent=23 // pred_fallthru
          _
        %s213 = sand.u32 %s77, 1
        %s214 = scalar_lea.sflag [#allocation6], %s213
        %s215 = sand.u32 %s77, 1
        %s216 = smul.addr %s215, 2
        %s217 = scalar_lea.vmem [#allocation7], %s216
        // Predicated region
        $region37: #{tpu_custom_call.1} parent=23 // pred_check
          %p218 = pneg %p87
        $region38: #{tpu_custom_call.1} parent=23 // pred_check_branch
          %220 = sbr.rel (%p218) target = $region40
        $region39: #{tpu_custom_call.1} parent=23 // pred_region
          %s222 = ssub.s32 32, 32
          %223 = vsyncadd %s214, %s222
          %s224 = sadd.s32 %s24, %s23
          %s225 = smul.addr %s224, 32
          %s226 = scalar_lea.hbm %s1, %s225
          %s228 = sshll.u32 %s217, 4
          %s229 = int_to_ptr.vmem [resolvable:$true] %s228
          %231 = dma.vmem_to_hbm [thread:$0]  %s229, 32, %s226, %s214
        $region40: #{tpu_custom_call.1} parent=23 // pred_fallthru
          _
      $region24: #{tpu_custom_call.1} parent=5 // pred_fallthru
        _
      %p232 = scmp.le.s32.totalorder 2, %s13
      // Predicated region
      $region41: #{tpu_custom_call.1} parent=5 // pred_check
        %p233 = pneg %p232
      $region42: #{tpu_custom_call.1} parent=5 // pred_check_branch
        %235 = sbr.rel (%p233) target = $region44
      $region43: #{tpu_custom_call.1} parent=5 // pred_region
        %s236 = ssub.s32 %s13, 2
        // Predicated region
        $region45: #{tpu_custom_call.1} parent=43 // pred_check
          %p237 = pneg %p93
        $region46: #{tpu_custom_call.1} parent=43 // pred_check_branch
          %239 = sbr.rel (%p237) target = $region48
        $region47: #{tpu_custom_call.1} parent=43 // pred_region
          %s240 = sand.u32 %s78, 1
          %s241 = scalar_lea.sflag [#allocation6], %s240
          %s242 = sand.u32 %s78, 1
          %s243 = smul.addr %s242, 2
          %s244 = scalar_lea.vmem [#allocation7], %s243
          %245 = dma.done %s241, 32
        $region48: #{tpu_custom_call.1} parent=43 // pred_fallthru
          _
      $region44: #{tpu_custom_call.1} parent=5 // pred_fallthru
        _
    $region6: #{tpu_custom_call.1} parent=1 // loop_footer
      %s17 = sadd.s32 1, %s13
    $region7: #{tpu_custom_call.1} parent=1 // loop_footer_branch
      %12 = sbr.rel target = $region3
    $region8: #{tpu_custom_call.1} parent=1 // loop_exit
      _
    %246 = vsyncpa [#allocation5], 1
    %s247 = scalar_lea.sflag [#allocation5], 1
    %248 = vsyncpa %s247, 1
    %249 = vsyncpa [#allocation6], 1
    %s250 = scalar_lea.sflag [#allocation6], 1
    %251 = vsyncpa %s250, 1

</llo_original>
